<compile_context>
chip_gen: v7x
topology: tpu7x:2x2x1
jax: 0.10.0
libtpu: 0.0.40
codegen_flags: <defaults>
</compile_context>

<pallas_src>
import functools

import jax
import jax.numpy as jnp
from jax.experimental import pallas as pl
from jax.experimental.pallas import tpu as pltpu


def _topk_acc_kernel(scores_ref, tgt_ref, ks_ref, acc_ref, *, num_classes,
                     tie_break):
    """One row block: fused target-score gather, rank, per-k correct counts.

    scores_ref : (TN, C)  logits tile (native dtype, lane dim = full C)
    tgt_ref    : (TN, 1)  int32 target class ids
    ks_ref     : (1, K)   int32 top-k thresholds
    acc_ref    : (1, K)   float32 resident accumulator (one per core split)
    """
    i = pl.program_id(1)                 # row-block index within this split

    @pl.when(i == 0)
    def _():
        acc_ref[...] = jnp.zeros_like(acc_ref)

    scores = scores_ref[...]                                    # (TN, C)
    tgt = tgt_ref[...]                                          # (TN, 1) i32
    col = jax.lax.broadcasted_iota(jnp.int32, scores.shape, 1)  # loop-invariant

    if jnp.issubdtype(scores_ref.dtype, jnp.floating):
        lowest = -jnp.inf
    else:
        lowest = jnp.iinfo(scores_ref.dtype).min

    # Fused gather of the target's score: select + XLU lane-max on data that
    # is already in vregs (no separate HBM gather pass in the wrapper).
    tscore = jnp.max(jnp.where(col == tgt, scores, lowest),
                     axis=1, keepdims=True)                     # (TN, 1)

    # Classes that outrank the target (ties -> lower class index wins,
    # matching torch.topk / lax.top_k stable ordering).  Native dtype compares.
    beats = scores > tscore
    if tie_break:
        beats = beats | ((scores == tscore) & (col < tgt))
    rank = jnp.sum(beats.astype(jnp.int32), axis=1, keepdims=True)  # XLU

    valid = (tgt >= 0) & (tgt < num_classes)                    # (TN, 1)
    correct = ((rank < ks_ref[...]) & valid).astype(jnp.float32)  # (TN, K)
    acc_ref[...] += jnp.sum(correct, axis=0, keepdims=True)     # (1, K) XLU


def _rank_counts_jax(scores, targets, ks, num_classes, tie_break):
    """Pure-JAX mirror of the kernel, used for the < block_n leftover rows."""
    if scores.shape[0] == 0:
        return jnp.zeros((len(ks),), jnp.float32)
    tgt = targets.astype(jnp.int32)[:, None]
    tscore = jnp.take_along_axis(scores, jnp.clip(tgt, 0, num_classes - 1),
                                 axis=1)
    col = jnp.arange(num_classes, dtype=jnp.int32)[None, :]
    beats = scores > tscore
    if tie_break:
        beats = beats | ((scores == tscore) & (col < tgt))
    rank = jnp.sum(beats.astype(jnp.int32), axis=1, keepdims=True)
    valid = (tgt >= 0) & (tgt < num_classes)
    return jnp.stack(
        [jnp.sum(((rank < k) & valid).astype(jnp.float32)) for k in ks])


def _chip_kind():
    try:
        return jax.devices()[0].device_kind.lower()
    except Exception:
        return ""


def topk_accuracy(outputs, targets, top_ranks=(1,), *, block_n=None,
                  core_splits=None, assume_distinct_logits=False,
                  vmem_limit_bytes=None):
    """Pallas TPU implementation of TopKAccuracy.forward.

    outputs: [N, C] float logits (any float dtype; streamed as-is, no pad).
    targets: [N] int class ids.
    Returns {"top_k": float32 scalar sum of correct samples} per k.
    """
    n, c = outputs.shape
    ks = tuple(int(k) for k in top_ranks)
    n_ranks = len(ks)
    tie_break = not assume_distinct_logits

    itemsize = jnp.dtype(outputs.dtype).itemsize
    sub = max(8, 32 // max(1, itemsize))       # native sublane packing

    kind = _chip_kind()
    two_cores = ("v7" in kind) or ("7x" in kind)          # 2 TCs per chip
    big_vmem = ("v5" in kind) or ("v6" in kind)           # 128 MiB VMEM chips
    if core_splits is None:
        core_splits = 2 if two_cores else 1
    if vmem_limit_bytes is None:
        vmem_limit_bytes = (96 if big_vmem else 48) * 1024 * 1024
    per_buffer_bytes = (8 if big_vmem else 4) * 1024 * 1024

    targets = targets.astype(jnp.int32)

    # Row tile: as large as the per-buffer VMEM budget allows, rounded to the
    # dtype's sublane packing, never larger than what whole blocks can cover.
    if block_n is None:
        block_n = per_buffer_bytes // max(1, c * itemsize)
    block_n = max(sub, min(int(block_n), 4096))
    block_n = (block_n // sub) * sub
    if n >= sub:
        block_n = min(block_n, (n // sub) * sub)

    num_blocks = n // block_n
    core_splits = max(1, int(core_splits))
    if num_blocks < core_splits:
        core_splits = 1
    num_blocks -= num_blocks % core_splits     # leftovers go to the JAX tail
    m = num_blocks * block_n                   # rows handled by the kernel
    row_tiles = num_blocks // core_splits if num_blocks else 0

    total = jnp.zeros((n_ranks,), jnp.float32)

    if num_blocks > 0:
        ks_arr = jnp.asarray(ks, dtype=jnp.int32).reshape(1, n_ranks)
        targets2d = targets.reshape(-1, 1)

        kernel = functools.partial(_topk_acc_kernel, num_classes=c,
                                   tie_break=tie_break)
        cost = pl.CostEstimate(
            flops=int(6 * m * c),
            transcendentals=0,
            bytes_accessed=int(m * c * itemsize + m * 4 + 4 * n_ranks))

        sums = pl.pallas_call(
            kernel,
            out_shape=jax.ShapeDtypeStruct((core_splits, 1, n_ranks),
                                           jnp.float32),
            grid_spec=pltpu.PrefetchScalarGridSpec(
                num_scalar_prefetch=0,
                grid=(core_splits, row_tiles),
                in_specs=[
                    pl.BlockSpec((block_n, c),
                                 lambda s, i: (s * row_tiles + i, 0)),
                    pl.BlockSpec((block_n, 1),
                                 lambda s, i: (s * row_tiles + i, 0)),
                    pl.BlockSpec((1, n_ranks), lambda s, i: (0, 0)),
                ],
                out_specs=pl.BlockSpec((None, 1, n_ranks),
                                       lambda s, i: (s, 0, 0)),
            ),
            compiler_params=pltpu.CompilerParams(
                dimension_semantics=("parallel", "arbitrary"),
                vmem_limit_bytes=vmem_limit_bytes),
            cost_estimate=cost,
        )(outputs, targets2d, ks_arr)

        total = total + jnp.sum(sums, axis=(0, 1))   # combine per-split sums

    if m < n:
        # Leftover rows (< core_splits * block_n of them): tiny pure-JAX pass
        # -- avoids padding/copying the full N x C logits array in HBM.
        total = total + _rank_counts_jax(outputs[m:], targets[m:], ks, c,
                                         tie_break)

    return {f"top_{k}": total[idx] for idx, k in enumerate(ks)}


def _reference(outputs, targets, top_ranks):
    """Pure-JAX reference mirroring the PyTorch module (uses lax.top_k)."""
    max_rank = max(top_ranks)
    _, pred = jax.lax.top_k(outputs, max_rank)          # (N, max_rank)
    pred = pred.T                                       # (max_rank, N)
    correct = pred == targets.reshape(1, -1)            # (max_rank, N)
    return {
        f"top_{k}": jnp.sum(correct[:k].astype(jnp.float32))
        for k in top_ranks
    }


if __name__ == "__main__":
    key = jax.random.PRNGKey(0)
    cases = [
        (16, 128, (1, 5)),   # exact-block path
        (13, 128, (1, 5)),   # leftover rows -> pure-JAX tail path
        (16, 130, (1, 3)),   # class dim not a multiple of 128 (no padding)
    ]
    for idx, (n, c, ranks) in enumerate(cases):
        k_out, k_tgt = jax.random.split(jax.random.fold_in(key, idx))
        outputs = jax.random.normal(k_out, (n, c), dtype=jnp.float32)
        targets = jax.random.randint(k_tgt, (n,), 0, c, dtype=jnp.int32)

        got = topk_accuracy(outputs, targets, top_ranks=ranks)
        got = {name: jax.block_until_ready(v) for name, v in got.items()}
        want = _reference(outputs, targets, ranks)
        for name in got:
            assert float(got[name]) == float(want[name]), (
                idx, name, float(got[name]), float(want[name]))

    print("KERNEL_OK")
</pallas_src>

<mosaic_0001>
module attributes {stable_mosaic.version = 11 : i64} {
  func.func @_topk_acc_kernel(%arg0: i32, %arg1: i32, %arg2: memref<16x128xf32, #tpu.memory_space<vmem>>, %arg3: memref<16x1xi32, #tpu.memory_space<vmem>>, %arg4: memref<1x2xi32, #tpu.memory_space<vmem>>, %arg5: memref<1x1x2xf32, #tpu.memory_space<vmem>>) attributes {dimension_semantics = [#tpu.dimension_semantics<parallel>, #tpu.dimension_semantics<arbitrary>], iteration_bounds = array<i64: 1, 1>, scalar_prefetch = 0 : i64, scratch_operands = 0 : i64, tpu.core_type = #tpu.core_type<tc>, window_params = [{transform_indices = @transform_0, window_bounds = array<i64: 16, 128>}, {transform_indices = @transform_1, window_bounds = array<i64: 16, 1>}, {pipeline_mode = #tpu.pipeline_mode<synchronous>, transform_indices = @transform_2, window_bounds = array<i64: 1, 2>}, {transform_indices = @transform_3, window_bounds = array<i64: 1, 1, 2>}]} {
    %c0_i32 = arith.constant 0 : i32
    %0 = arith.cmpi eq, %arg1, %c0_i32 : i32
    %1 = arith.extui %0 : i1 to i32
    %c0_i32_0 = arith.constant 0 : i32
    %2 = arith.cmpi ne, %1, %c0_i32_0 : i32
    scf.if %2 {
      %cst_16 = arith.constant 0.000000e+00 : f32
      %44 = vector.broadcast %cst_16 : f32 to vector<1x2xf32>
      %c0_17 = arith.constant 0 : index
      %c0_18 = arith.constant 0 : index
      %c0_19 = arith.constant 0 : index
      %45 = vector.load %arg5[%c0_17, %c0_18, %c0_19] : memref<1x1x2xf32, #tpu.memory_space<vmem>>, vector<1x1x2xf32>
      %46 = vector.shape_cast %45 : vector<1x1x2xf32> to vector<1x2xf32>
      %47 = vector.shape_cast %44 : vector<1x2xf32> to vector<1x1x2xf32>
      tpu.vector_store %arg5[%c0_17, %c0_18, %c0_19], %47 {strides = array<i32>} : memref<1x1x2xf32, #tpu.memory_space<vmem>>, vector<1x1x2xf32>,
    } else {
    }
    %c0 = arith.constant 0 : index
    %c0_1 = arith.constant 0 : index
    %3 = vector.load %arg2[%c0, %c0_1] : memref<16x128xf32, #tpu.memory_space<vmem>>, vector<16x128xf32>
    %c0_2 = arith.constant 0 : index
    %c0_3 = arith.constant 0 : index
    %4 = vector.load %arg3[%c0_2, %c0_3] : memref<16x1xi32, #tpu.memory_space<vmem>>, vector<16x1xi32>
    %5 = tpu.iota {dimensions = array<i32: 1>} : vector<16x128xi32>
    %6 = vector.broadcast %4 : vector<16x1xi32> to vector<16x128xi32>
    %7 = arith.cmpi eq, %5, %6 : vector<16x128xi32>
    %cst = arith.constant 0xFF800000 : f32
    %8 = vector.broadcast %cst : f32 to vector<16x128xf32>
    %9 = arith.select %7, %3, %8 : vector<16x128xi1>, vector<16x128xf32>
    %cst_4 = arith.constant dense<0xFF800000> : vector<16xf32>
    %10 = vector.multi_reduction <maximumf>, %9, %cst_4 [1] : vector<16x128xf32> to vector<16xf32>
    %11 = vector.shape_cast %10 : vector<16xf32> to vector<16x1xf32>
    %12 = vector.broadcast %11 : vector<16x1xf32> to vector<16x128xf32>
    %13 = arith.cmpf ogt, %3, %12 : vector<16x128xf32>
    %14 = vector.broadcast %11 : vector<16x1xf32> to vector<16x128xf32>
    %15 = arith.cmpf oeq, %3, %14 : vector<16x128xf32>
    %16 = vector.broadcast %4 : vector<16x1xi32> to vector<16x128xi32>
    %17 = arith.cmpi slt, %5, %16 : vector<16x128xi32>
    %18 = arith.andi %15, %17 : vector<16x128xi1>
    %19 = arith.ori %13, %18 : vector<16x128xi1>
    %20 = arith.extui %19 : vector<16x128xi1> to vector<16x128xi32>
    %cst_5 = arith.constant dense<0> : vector<16xi32>
    %21 = vector.multi_reduction <add>, %20, %cst_5 [1] : vector<16x128xi32> to vector<16xi32>
    %22 = vector.shape_cast %21 : vector<16xi32> to vector<16x1xi32>
    %c0_i32_6 = arith.constant 0 : i32
    %23 = vector.broadcast %c0_i32_6 : i32 to vector<16x1xi32>
    %24 = arith.cmpi sge, %4, %23 : vector<16x1xi32>
    %c128_i32 = arith.constant 128 : i32
    %25 = vector.broadcast %c128_i32 : i32 to vector<16x1xi32>
    %26 = arith.cmpi slt, %4, %25 : vector<16x1xi32>
    %27 = arith.andi %24, %26 : vector<16x1xi1>
    %c0_7 = arith.constant 0 : index
    %c0_8 = arith.constant 0 : index
    %28 = vector.load %arg4[%c0_7, %c0_8] : memref<1x2xi32, #tpu.memory_space<vmem>>, vector<1x2xi32>
    %29 = vector.broadcast %22 : vector<16x1xi32> to vector<16x2xi32>
    %30 = vector.broadcast %28 : vector<1x2xi32> to vector<16x2xi32>
    %31 = arith.cmpi slt, %29, %30 : vector<16x2xi32>
    %32 = vector.broadcast %27 : vector<16x1xi1> to vector<16x2xi1>
    %33 = arith.andi %31, %32 : vector<16x2xi1>
    %34 = arith.extui %33 : vector<16x2xi1> to vector<16x2xi32>
    %35 = arith.sitofp %34 : vector<16x2xi32> to vector<16x2xf32>
    %c0_9 = arith.constant 0 : index
    %c0_10 = arith.constant 0 : index
    %c0_11 = arith.constant 0 : index
    %36 = vector.load %arg5[%c0_9, %c0_10, %c0_11] : memref<1x1x2xf32, #tpu.memory_space<vmem>>, vector<1x1x2xf32>
    %37 = vector.shape_cast %36 : vector<1x1x2xf32> to vector<1x2xf32>
    %cst_12 = arith.constant dense<0.000000e+00> : vector<2xf32>
    %38 = vector.multi_reduction <add>, %35, %cst_12 [0] : vector<16x2xf32> to vector<2xf32>
    %39 = vector.shape_cast %38 : vector<2xf32> to vector<1x2xf32>
    %40 = arith.addf %37, %39 : vector<1x2xf32>
    %c0_13 = arith.constant 0 : index
    %c0_14 = arith.constant 0 : index
    %c0_15 = arith.constant 0 : index
    %41 = vector.load %arg5[%c0_13, %c0_14, %c0_15] : memref<1x1x2xf32, #tpu.memory_space<vmem>>, vector<1x1x2xf32>
    %42 = vector.shape_cast %41 : vector<1x1x2xf32> to vector<1x2xf32>
    %43 = vector.shape_cast %40 : vector<1x2xf32> to vector<1x1x2xf32>
    tpu.vector_store %arg5[%c0_13, %c0_14, %c0_15], %43 {strides = array<i32>} : memref<1x1x2xf32, #tpu.memory_space<vmem>>, vector<1x1x2xf32>,
    return
  }
  func.func @transform_0(%arg0: i32, %arg1: i32) -> (i32, i32) {
    %c1_i32 = arith.constant 1 : i32
    %0 = arith.muli %arg0, %c1_i32 : i32
    %1 = arith.addi %0, %arg1 : i32
    %c0_i32 = arith.constant 0 : i32
    %c0_i32_0 = arith.constant 0 : i32
    return %1, %c0_i32 : i32, i32
  }
  func.func @transform_1(%arg0: i32, %arg1: i32) -> (i32, i32) {
    %c1_i32 = arith.constant 1 : i32
    %0 = arith.muli %arg0, %c1_i32 : i32
    %1 = arith.addi %0, %arg1 : i32
    %c0_i32 = arith.constant 0 : i32
    %c0_i32_0 = arith.constant 0 : i32
    return %1, %c0_i32 : i32, i32
  }
  func.func @transform_2(%arg0: i32, %arg1: i32) -> (i32, i32) {
    %c0_i32 = arith.constant 0 : i32
    %c0_i32_0 = arith.constant 0 : i32
    %c0_i32_1 = arith.constant 0 : i32
    return %c0_i32, %c0_i32_0 : i32, i32
  }
  func.func @transform_3(%arg0: i32, %arg1: i32) -> (i32, i32, i32) {
    %c0_i32 = arith.constant 0 : i32
    %c0_i32_0 = arith.constant 0 : i32
    %c0_i32_1 = arith.constant 0 : i32
    return %arg0, %c0_i32, %c0_i32_0 : i32, i32, i32
  }
}

</mosaic_0001>

<llo_original>
// kernel: tpu_custom_call.1
$region0: #{tpu_custom_call.1}
  #allocation0 [shape = 'u32[]', space=smem, size = 0x4, offset = 0x4, fixed_abs, tag = 'smem constant byte address 0x4 - core index']
  #allocation1 [shape = 'u32[144,128]{1,0:T(1,128)}', space=vmem, size = 0x12000, scoped, tag = 'internal scratch']
  %s0 = inlined_call_operand.vmem [shape: f32[16,128], index: 0, kind: input, shape index: {}]
  %s1 = inlined_call_operand.vmem [shape: s32[16,1], index: 1, kind: input, shape index: {}]
  %s2 = inlined_call_operand.vmem [shape: s32[1,2], index: 2, kind: input, shape index: {}]
  %s3 = inlined_call_operand.hbm [shape: f32[1,1,2], index: 3, kind: output, shape index: {}]
  %s4 = sld [smem:[#allocation0]]
  $region26: #{tpu_custom_call.1} parent=0
    _
  %s6 = ssub.s32 1, %s4
  %s7 = scalar_select 0, %s6, %s4
  $region1: #{tpu_custom_call.1} parent=0
    #allocation2 [shape = 'u8[512]{0}', space=vmem, size = 0x400, scoped, tag = 'output window, operand 0, single buffered']
    #allocation3 [shape = 's32[1]{0}', space=sflag, size = 0x4, scoped, tag = 'scoped memory for tpu_custom_call.1']
    %8 = vsyncpa [#allocation3], 0
    // Predicated region
    $region2: #{tpu_custom_call.1} parent=1 // pred_check
      _
    $region3: #{tpu_custom_call.1} parent=1 // pred_check_branch
      %10 = sbr.rel (0) target = $region5
    $region4: #{tpu_custom_call.1} parent=1 // pred_region
      %s11 = sadd.s32 0, 0
      %s12 = smul.u32 2, %s11
      %p13 = scmp.lt.s32.totalorder %s12, 1
      %s14 = scalar_select %p13, %s12, 1
      %s15 = smul.addr %s14, 8
      %s16 = scalar_lea.vmem %s0, %s15
      %s17 = sadd.s32 0, 0
      %s18 = smul.u32 2, %s17
    $region5: #{tpu_custom_call.1} parent=1 // pred_fallthru
      _
    // Predicated region
    $region6: #{tpu_custom_call.1} parent=1 // pred_check
      _
    $region7: #{tpu_custom_call.1} parent=1 // pred_check_branch
      %20 = sbr.rel (0) target = $region9
    $region8: #{tpu_custom_call.1} parent=1 // pred_region
      %s21 = sadd.s32 0, 0
      %s22 = smul.u32 2, %s21
      %p23 = scmp.lt.s32.totalorder %s22, 1
      %s24 = scalar_select %p23, %s22, 1
      %s25 = smul.addr %s24, 8
      %s26 = scalar_lea.vmem %s1, %s25
      %s27 = sadd.s32 0, 0
      %s28 = smul.u32 2, %s27
    $region9: #{tpu_custom_call.1} parent=1 // pred_fallthru
      _
    // Predicated region
    $region10: #{tpu_custom_call.1} parent=1 // pred_check
      _
    $region11: #{tpu_custom_call.1} parent=1 // pred_check_branch
      %30 = sbr.rel (0) target = $region13
    $region12: #{tpu_custom_call.1} parent=1 // pred_region
      _
    $region13: #{tpu_custom_call.1} parent=1 // pred_fallthru
      _
    %s31 = sadd.s32 0, 0
    %s32 = smul.u32 2, %s31
    %p33 = scmp.lt.s32.totalorder %s32, 1
    %s34 = scalar_select %p33, %s32, 1
    %s35 = smul.addr %s34, 8
    %s36 = scalar_lea.vmem %s0, %s35
    %s37 = sadd.s32 0, 0
    %s38 = smul.u32 2, %s37
    %p39 = scmp.lt.s32.totalorder %s38, 1
    %s40 = scalar_select %p39, %s38, 1
    %s41 = smul.addr %s40, 8
    %s42 = scalar_lea.vmem %s1, %s41
    %s43 = sadd.s32 0, 0
    %s44 = smul.u32 2, %s43
    %p45 = scmp.lt.s32.totalorder %s44, 1
    %s46 = scalar_select %p45, %s44, 1
    %s47 = smul.addr %s46, 8
    %s48 = scalar_lea.vmem %s0, %s47
    %s49 = sadd.s32 0, 0
    %s50 = smul.u32 2, %s49
    %s51 = sadd.s32 0, 0
    %s52 = smul.u32 2, %s51
    %p53 = scmp.lt.s32.totalorder %s52, 1
    %s54 = scalar_select %p53, %s52, 1
    %s55 = smul.addr %s54, 8
    %s56 = scalar_lea.vmem %s1, %s55
    %s57 = sadd.s32 0, 0
    %s58 = smul.u32 2, %s57
    %p59 = scmp.eq.s32.totalorder 0, 0
    // Predicated region
    $region14: #{tpu_custom_call.1} parent=1 // pred_check
      %p60 = pneg %p59
    $region15: #{tpu_custom_call.1} parent=1 // pred_check_branch
      %62 = sbr.rel (%p60) target = $region17
    $region16: #{tpu_custom_call.1} parent=1 // pred_region
      %vm63 = vcmask 8192
      %64 = vst.msk [vmem:[#allocation2] sm:$0x1] %vm63, 0.0
    $region17: #{tpu_custom_call.1} parent=1 // pred_fallthru
      _
    %v65 = vld [vmem:[%s48] sm:$0xff]
    %v66 = vld [vmem:[%s48 + $0x8] sm:$0xff]
    %v67 = vld [vmem:[%s56] sm:$0xff]
    %v68 = vld [vmem:[%s56 + $0x8] sm:$0xff]
    %v69 = vlaneseq
    %v70 = vand.u32 %v69, 127
    %71 = vset.pattern.permute.xlu0 0
    %72 = vperm.xlu0 %71, %v67
    %v73 = vpop.permute.xlu0 %72
    %74 = vset.pattern.permute.xlu0 0
    %75 = vperm.xlu0 %74, %v68
    %v76 = vpop.permute.xlu0 %75
    %vm77 = vcmp.eq.s32.totalorder %v70, %v73
    %vm78 = vcmp.eq.s32.totalorder %v70, %v76
    %v79 = vsel %vm77, %v65, -inf
    %v80 = vsel %vm78, %v66, -inf
    %81 = vmax.xlane.f32.xlu0 %v79
    %v82 = vpop.xlane.xlu0 %81
    %83 = vmax.xlane.f32.xlu0 %v80
    %v84 = vpop.xlane.xlu0 %83
    %vm85 = vcmp.gt.f32.partialorder %v65, %v82
    %vm86 = vcmp.gt.f32.partialorder %v66, %v84
    %vm87 = vcmp.eq.f32.partialorder %v65, %v82
    %vm88 = vcmp.eq.f32.partialorder %v66, %v84
    %vm89 = vcmp.lt.s32.totalorder %v70, %v73
    %vm90 = vcmp.lt.s32.totalorder %v70, %v76
    %vm91 = vmand %vm87, %vm89
    %vm92 = vmand %vm88, %vm90
    %vm93 = vmor %vm85, %vm91
    %vm94 = vmor %vm86, %vm92
    %v95 = vsel %vm93, 1, 0
    %v96 = vsel %vm94, 1, 0
    %v97 = vand.u32 %v95, 65535
    %v98 = vshrl.u32 %v95, 16
    %v99 = vcvt.s32.f32 %v97
    %v100 = vcvt.s32.f32 %v98
    %101 = vadd.xlane.f32.xlu0 %v99
    %v102 = vpop.xlane.xlu0 %101
    %103 = vadd.xlane.f32.xlu0 %v100
    %v104 = vpop.xlane.xlu0 %103
    %v105 = vcvt.f32.s32 %v102
    %v106 = vcvt.f32.s32 %v104
    %v107 = vshll.u32 %v106, 16
    %v108 = vadd.s32 %v107, %v105
    %v109 = vand.u32 %v96, 65535
    %v110 = vshrl.u32 %v96, 16
    %v111 = vcvt.s32.f32 %v109
    %v112 = vcvt.s32.f32 %v110
    %113 = vadd.xlane.f32.xlu0 %v111
    %v114 = vpop.xlane.xlu0 %113
    %115 = vadd.xlane.f32.xlu0 %v112
    %v116 = vpop.xlane.xlu0 %115
    %v117 = vcvt.f32.s32 %v114
    %v118 = vcvt.f32.s32 %v116
    %v119 = vshll.u32 %v118, 16
    %v120 = vadd.s32 %v119, %v117
    %vm121 = vcmp.ge.s32.totalorder %v67, 0
    %vm122 = vcmp.ge.s32.totalorder %v68, 0
    %vm123 = vcmp.lt.s32.totalorder %v67, 128
    %vm124 = vcmp.lt.s32.totalorder %v68, 128
    %vm125 = vmand %vm121, %vm123
    %vm126 = vmand %vm122, %vm124
    %v127 = vld [vmem:[%s2] sm:$0x1]
    %v128 = vlaneseq
    %v129 = vshrl.u32 %v128, 7
    %v130 = vsub.s32 0, %v129
    %v131 = vrot.slane %v127, %v130
    %vm132 = vcmp.lt.s32.totalorder %v108, %v131
    %vm133 = vcmp.lt.s32.totalorder %v120, %v131
    %v134 = vsel %vm125, 1, 0
    %v135 = vsel %vm126, 1, 0
    %136 = vset.pattern.permute.xlu0 0
    %137 = vperm.xlu0 %136, %v134
    %v138 = vpop.permute.xlu0 %137
    %139 = vset.pattern.permute.xlu0 0
    %140 = vperm.xlu0 %139, %v135
    %v141 = vpop.permute.xlu0 %140
    %vm142 = vcmp.eq.s32.totalorder %v138, 1
    %vm143 = vcmp.eq.s32.totalorder %v141, 1
    %vm144 = vmand %vm132, %vm142
    %vm145 = vmand %vm133, %vm143
    %v146 = vsel %vm144, 1, 0
    %v147 = vsel %vm145, 1, 0
    %v148 = vcvt.s32.f32 %v146
    %v149 = vcvt.s32.f32 %v147
    %v150 = vld [vmem:[#allocation2] sm:$0x1]
    %vm151 = vcmask 15360
    %v152 = vsel %vm151, %v148, 0.0
    %v153 = vsel %vm151, %v149, 0.0
    %v154 = vadd.f32 %v152, %v153
    %v155 = vrot.slane %v154, 4
    %v156 = vadd.f32 %v154, %v155
    %v157 = vrot.slane %v156, 2
    %v158 = vadd.f32 %v156, %v157
    %v159 = vrot.slane %v158, 1
    %v160 = vadd.f32 %v158, %v159
    %v161 = vadd.f32 %v150, %v160
    %vm162 = vcmask 8192
    %163 = vst.msk [vmem:[#allocation2] sm:$0x1] %vm162, %v161
    // Predicated region
    $region18: #{tpu_custom_call.1} parent=1 // pred_check
      _
    $region19: #{tpu_custom_call.1} parent=1 // pred_check_branch
      %165 = sbr.rel (0) target = $region21
    $region20: #{tpu_custom_call.1} parent=1 // pred_region
      %s167 = ssub.s32 16, 16
      %168 = vsyncadd [#allocation3], %s167
      %s170 = sshll.u32 [#allocation2], 4
      %s171 = int_to_ptr.vmem [resolvable:$true] %s170
      %173 = dma.vmem_to_hbm [thread:$0]  %s171, 16, %s3, [#allocation3]
    $region21: #{tpu_custom_call.1} parent=1 // pred_fallthru
      _
    // Predicated region
    $region22: #{tpu_custom_call.1} parent=1 // pred_check
      _
    $region23: #{tpu_custom_call.1} parent=1 // pred_check_branch
      %175 = sbr.rel (0) target = $region25
    $region24: #{tpu_custom_call.1} parent=1 // pred_region
      %176 = dma.done [#allocation3], 16
    $region25: #{tpu_custom_call.1} parent=1 // pred_fallthru
      _
    %177 = vsyncpa [#allocation3], 1

</llo_original>
